<compile_context>
chip_gen: v5e
topology: v5e:2x2
jax: 0.10.0
libtpu: 0.0.40
codegen_flags: <defaults>
</compile_context>

<pallas_src>
import functools

import jax
import jax.numpy as jnp
from jax.experimental import pallas as pl
from jax.experimental.pallas import tpu as pltpu


_OUT_LANES = 128   # one lane-dense (1, 1, 128) row of per-batch partial sums
_BIG = 1e30        # "infinity" used for masking padded rows/lanes


# ---------------------------------------------------------------------------
# Chamfer (+ optional normal-consistency) kernel
#   grid = (batch, gt_tiles); per step: resident (8, Pp_pad) augmented pred block
#   vs one (8, tile_pg) augmented GT block; d = one MXU matmul, oriented
#   (tile_pg, Pp_pad) with the pred axis on lanes.  Running reductions live in
#   small lane-dense VMEM scratch; one (1, 1, 128) row is stored per batch
#   element at the last GT tile.
#   out lanes: 0 = sum_p min_g d, 1 = sum_g min_p d, 2/3 = normal sums (if on)
# ---------------------------------------------------------------------------
def _chamfer_kernel(*refs, with_normals, num_pred, num_gt, tile_pg):
    if with_normals:
        (xa_ref, npa_ref, ya_ref, nga_ref, out_ref,
         minx_ref, cosx_ref, sumy_ref, sumny_ref) = refs
    else:
        xa_ref, ya_ref, out_ref, minx_ref, sumy_ref = refs
        npa_ref = nga_ref = cosx_ref = sumny_ref = None

    g = pl.program_id(1)

    x = xa_ref[0]            # (8, Pp_pad)  rows: [x0, x1, x2, |x|^2, 1, 0, 0, 0]
    y = ya_ref[0]            # (8, tg)      rows: [-2y0, -2y1, -2y2, 1, |y|^2, 0, 0, 0]
    pp = x.shape[1]
    tg = y.shape[1]

    # ---- init running accumulators on the first GT tile ----
    @pl.when(g == 0)
    def _init():
        minx_ref[...] = jnp.full_like(minx_ref, _BIG)
        sumy_ref[...] = jnp.zeros_like(sumy_ref)
        if with_normals:
            cosx_ref[...] = jnp.zeros_like(cosx_ref)
            sumny_ref[...] = jnp.zeros_like(sumny_ref)

    # ---- d[g, p] = |x_p - y_g|^2 via ONE augmented K=8 MXU matmul ----
    # contraction over the sublane axis of both blocks (lhs-transposed dot);
    # HIGHEST precision avoids the reduced-pass bf16 path (cancellation concern).
    d = jax.lax.dot_general(
        y, x, dimension_numbers=(((0,), (0,)), ((), ())),
        precision=jax.lax.Precision.HIGHEST,
        preferred_element_type=jnp.float32)                    # (tg, pp)
    d = jnp.maximum(d, 0.0)                                     # clamp cancellation

    # ---- validity masks for the zero-padded pred lanes / GT rows ----
    lane_p = jax.lax.broadcasted_iota(jnp.int32, (1, pp), 1)
    valid_p = lane_p < num_pred                                  # (1, pp)
    row_g = jax.lax.broadcasted_iota(jnp.int32, (tg, 1), 0) + g * tile_pg
    valid_g = row_g < num_gt                                     # (tg, 1)

    d_gmask = jnp.where(valid_g, d, _BIG)    # padded GT rows out of pred->gt mins
    d_pmask = jnp.where(valid_p, d, _BIG)    # padded pred lanes out of gt->pred mins

    dmin_p = jnp.min(d_gmask, axis=0, keepdims=True)   # (1, pp): pred->gt, this tile
    dmin_g = jnp.min(d_pmask, axis=1, keepdims=True)   # (tg, 1): gt->pred, final/tile
    sumy_ref[...] += jnp.sum(jnp.where(valid_g, dmin_g, 0.0), axis=0, keepdims=True)

    if with_normals:
        nx = npa_ref[0]      # (8, pp) pre-normalized pred normals in rows 0..2
        ny = nga_ref[0]      # (8, tg) pre-normalized GT   normals in rows 0..2
        cosm = jax.lax.dot_general(
            ny, nx, dimension_numbers=(((0,), (0,)), ((), ())),
            precision=jax.lax.Precision.HIGHEST,
            preferred_element_type=jnp.float32)                 # (tg, pp)

        iota_r = jax.lax.broadcasted_iota(jnp.float32, (tg, pp), 0)
        iota_l = jax.lax.broadcasted_iota(jnp.float32, (tg, pp), 1)

        # pred -> gt: first-match argmin inside the tile; online "best so far"
        # across tiles (strict '<' keeps the earlier tile on ties -> global
        # first-match, matching argmin semantics).
        first_r = jnp.min(jnp.where(d_gmask == dmin_p, iota_r, float(tg)),
                          axis=0, keepdims=True)                 # (1, pp)
        cos_p = jnp.sum(jnp.where(iota_r == first_r, cosm, 0.0),
                        axis=0, keepdims=True)                   # (1, pp)
        better = dmin_p < minx_ref[...]
        cosx_ref[...] = jnp.where(better, cos_p, cosx_ref[...])

        # gt -> pred: argmin over the (untiled) pred axis, finalized per tile.
        first_l = jnp.min(jnp.where(d_pmask == dmin_g, iota_l, float(pp)),
                          axis=1, keepdims=True)                 # (tg, 1)
        cos_g = jnp.sum(jnp.where(iota_l == first_l, cosm, 0.0),
                        axis=1, keepdims=True)                   # (tg, 1)
        sumny_ref[...] += jnp.sum(jnp.where(valid_g, 1.0 - jnp.abs(cos_g), 0.0),
                                  axis=0, keepdims=True)

    # running pred->gt min (after the normals block, which reads the old value)
    minx_ref[...] = jnp.minimum(minx_ref[...], dmin_p)

    # ---- finalize: reduce to per-batch scalars, one lane-dense store ----
    @pl.when(g == pl.num_programs(1) - 1)
    def _finalize():
        lane = jax.lax.broadcasted_iota(jnp.int32, (1, 1, _OUT_LANES), 2)
        sum_minx = jnp.sum(jnp.where(valid_p, minx_ref[...], 0.0))
        sum_miny = jnp.sum(sumy_ref[...])
        row = (jnp.where(lane == 0, sum_minx, 0.0) +
               jnp.where(lane == 1, sum_miny, 0.0))
        if with_normals:
            sum_ncx = jnp.sum(jnp.where(valid_p, 1.0 - jnp.abs(cosx_ref[...]), 0.0))
            sum_ncy = jnp.sum(sumny_ref[...])
            row = (row + jnp.where(lane == 2, sum_ncx, 0.0) +
                   jnp.where(lane == 3, sum_ncy, 0.0))
        out_ref[...] = row


# ---------------------------------------------------------------------------
# Wrapper-side packing: lane-dense augmented (N, 8, P) layouts
# ---------------------------------------------------------------------------
def _pack_pred_points(points):
    """(N, P, 3) -> (N, 8, P) with rows [x0, x1, x2, |x|^2, 1, 0, 0, 0]."""
    p = points.astype(jnp.float32)
    sq = jnp.sum(p * p, axis=-1, keepdims=True)
    ones = jnp.ones_like(sq)
    zeros = jnp.zeros(p.shape[:2] + (3,), jnp.float32)
    aug = jnp.concatenate([p, sq, ones, zeros], axis=-1)          # (N, P, 8)
    return jnp.transpose(aug, (0, 2, 1))                          # (N, 8, P)


def _pack_gt_points(points):
    """(N, P, 3) -> (N, 8, P) with rows [-2y0, -2y1, -2y2, 1, |y|^2, 0, 0, 0]."""
    p = points.astype(jnp.float32)
    sq = jnp.sum(p * p, axis=-1, keepdims=True)
    ones = jnp.ones_like(sq)
    zeros = jnp.zeros(p.shape[:2] + (3,), jnp.float32)
    aug = jnp.concatenate([-2.0 * p, ones, sq, zeros], axis=-1)
    return jnp.transpose(aug, (0, 2, 1))


def _pack_normals(normals, eps=1e-6):
    """(N, P, 3) -> (N, 8, P), pre-normalized so the in-kernel dot is the cosine."""
    n = normals.astype(jnp.float32)
    n = n / jnp.maximum(jnp.linalg.norm(n, axis=-1, keepdims=True), eps)
    zeros = jnp.zeros(n.shape[:2] + (5,), jnp.float32)
    aug = jnp.concatenate([n, zeros], axis=-1)
    return jnp.transpose(aug, (0, 2, 1))


def _pad_lanes(x, multiple):
    """Zero-pad the last (lane) axis up to a multiple of `multiple`."""
    size = x.shape[-1]
    pad = (-size) % multiple
    if pad == 0:
        return x
    widths = [(0, 0)] * (x.ndim - 1) + [(0, pad)]
    return jnp.pad(x, widths)


def chamfer_pallas(pred_aug, prednrm_aug, gt_aug, gtnrm_aug, *,
                   num_pred, num_gt, with_normals, tile_pg):
    """Per-batch chamfer (and optionally normal-consistency) partial sums.

    Inputs are lane-dense augmented (N, 8, P) arrays (see _pack_*), with the
    lane axis zero-padded: pred to a multiple of 128, GT to a multiple of tile_pg.
    Returns (N, 1, 128) f32: lane 0 = sum_p min_g d, lane 1 = sum_g min_p d,
    lanes 2/3 = the corresponding normal-consistency sums when with_normals.
    """
    N, _, pp_pad = pred_aug.shape
    pg_pad = gt_aug.shape[2]
    assert tile_pg % 128 == 0 and pg_pad % tile_pg == 0 and pp_pad % 128 == 0
    num_gt_tiles = pg_pad // tile_pg

    pred_spec = pl.BlockSpec((1, 8, pp_pad), lambda n, g: (n, 0, 0))   # resident over g
    gt_spec = pl.BlockSpec((1, 8, tile_pg), lambda n, g: (n, 0, g))
    out_spec = pl.BlockSpec((1, 1, _OUT_LANES), lambda n, g: (n, 0, 0))

    if with_normals:
        operands = (pred_aug, prednrm_aug, gt_aug, gtnrm_aug)
        in_specs = [pred_spec, pred_spec, gt_spec, gt_spec]
        scratch = [pltpu.VMEM((1, pp_pad), jnp.float32),   # running pred->gt min
                   pltpu.VMEM((1, pp_pad), jnp.float32),   # cos(normal) at current best
                   pltpu.VMEM((1, 1), jnp.float32),        # sum_g min_p d
                   pltpu.VMEM((1, 1), jnp.float32)]        # sum_g (1 - |cos|)
        n_mats = 8
    else:
        operands = (pred_aug, gt_aug)
        in_specs = [pred_spec, gt_spec]
        scratch = [pltpu.VMEM((1, pp_pad), jnp.float32),
                   pltpu.VMEM((1, 1), jnp.float32)]
        n_mats = 3

    # Scoped-VMEM budget from the actual footprint: double-buffered input blocks
    # + per-tile (tile_pg, pp_pad) f32 temporaries + accumulators; 2x headroom,
    # capped at 48 MiB (fits v5e/v6e 128 MiB and v7x 64 MiB physical).
    est_bytes = 4 * (4 * 8 * pp_pad + 4 * 8 * tile_pg
                     + n_mats * tile_pg * pp_pad + 8 * pp_pad + 4096)
    vmem_limit = int(min(48 * 1024 * 1024, max(2 * est_bytes, 4 * 1024 * 1024)))

    kernel = functools.partial(_chamfer_kernel, with_normals=with_normals,
                               num_pred=num_pred, num_gt=num_gt, tile_pg=tile_pg)

    return pl.pallas_call(
        kernel,
        out_shape=jax.ShapeDtypeStruct((N, 1, _OUT_LANES), jnp.float32),
        grid=(N, num_gt_tiles),
        in_specs=in_specs,
        out_specs=out_spec,
        scratch_shapes=scratch,
        compiler_params=pltpu.CompilerParams(
            # batch axis "parallel" (v7x megacore); GT-tile axis is the reduction.
            dimension_semantics=("parallel", "arbitrary"),
            vmem_limit_bytes=vmem_limit),
    )(*operands)


# ---------------------------------------------------------------------------
# MeshLoss.forward equivalent (glue in plain JAX, hot path in Pallas)
# ---------------------------------------------------------------------------
@functools.partial(jax.jit,
                   static_argnames=("chamfer_weight", "normal_weight", "edge_weight",
                                    "tile_pg"))
def mesh_loss_forward(points_pred, normals_pred, points_gt, normals_gt,
                      verts_pred, edges_pred,
                      chamfer_weight=1.0, normal_weight=0.0, edge_weight=0.1,
                      tile_pg=None):
    N, Pp, _ = points_pred.shape
    Pg = points_gt.shape[1]
    with_normals = (normal_weight != 0.0)   # static gate: compile the normal path out

    if tile_pg is None:
        # 256 keeps the per-step footprint ~10 MB at realistic Pp on v7x (64 MiB);
        # the normals path carries several full-tile temporaries -> 128.
        tile_pg = 128 if with_normals else 256
    assert tile_pg % 128 == 0, tile_pg

    pred_aug = _pad_lanes(_pack_pred_points(points_pred), 128)
    gt_aug = _pad_lanes(_pack_gt_points(points_gt), tile_pg)
    if with_normals:
        prednrm_aug = _pad_lanes(_pack_normals(normals_pred), 128)
        gtnrm_aug = _pad_lanes(_pack_normals(normals_gt), tile_pg)
    else:
        prednrm_aug = gtnrm_aug = None

    part = chamfer_pallas(pred_aug, prednrm_aug, gt_aug, gtnrm_aug,
                          num_pred=Pp, num_gt=Pg,
                          with_normals=with_normals, tile_pg=tile_pg)   # (N, 1, 128)

    # pytorch3d chamfer_distance with point_reduction="mean", batch_reduction="mean"
    cham_loss = jnp.mean(part[:, 0, 0]) / Pp + jnp.mean(part[:, 0, 1]) / Pg
    if with_normals:
        normal_loss = jnp.mean(part[:, 0, 2]) / Pp + jnp.mean(part[:, 0, 3]) / Pg
    else:
        # normal-consistency statically skipped (weight == 0): reported as 0; the
        # weighted total is identical to the reference module.
        normal_loss = jnp.float32(0.0)

    # mesh_edge_loss (target_length=0, shared topology across batch): plain XLA on
    # purpose — a dedicated pallas_call for an (N, E, 3) subtract-square-sum is
    # launch-overhead dominated and lane-sparse.
    v0 = jnp.take(verts_pred, edges_pred[:, 0], axis=1)   # (N, E, 3)
    v1 = jnp.take(verts_pred, edges_pred[:, 1], axis=1)   # (N, E, 3)
    edge_loss = jnp.mean(jnp.sum((v0 - v1) ** 2, axis=-1))

    mesh_total = (chamfer_weight * cham_loss +
                  normal_weight * normal_loss +
                  edge_weight * edge_loss)
    total_loss = jnp.float32(0.0) + mesh_total / 1.0   # single pred-mesh stage
    losses = {"chamfer_0": cham_loss, "normal_0": normal_loss, "edge_0": edge_loss}
    return total_loss, losses


# ---------------------------------------------------------------------------
# Pure-JAX reference for correctness
# ---------------------------------------------------------------------------
def mesh_loss_reference(points_pred, normals_pred, points_gt, normals_gt,
                        verts_pred, edges_pred,
                        chamfer_weight=1.0, normal_weight=0.0, edge_weight=0.1):
    d = jnp.sum((points_pred[:, :, None, :] - points_gt[:, None, :, :]) ** 2, -1)
    cham = jnp.mean(jnp.min(d, axis=2)) + jnp.mean(jnp.min(d, axis=1))
    idx_x = jnp.argmin(d, axis=2)
    idx_y = jnp.argmin(d, axis=1)
    sel_ng = jnp.take_along_axis(normals_gt, idx_x[..., None], axis=1)
    sel_np = jnp.take_along_axis(normals_pred, idx_y[..., None], axis=1)

    def one_minus_abs_cos(a, b, eps=1e-6):
        num = jnp.sum(a * b, -1)
        den = jnp.linalg.norm(a, axis=-1) * jnp.linalg.norm(b, axis=-1)
        return 1.0 - jnp.abs(num / jnp.maximum(den, eps))

    norm = (jnp.mean(one_minus_abs_cos(normals_pred, sel_ng)) +
            jnp.mean(one_minus_abs_cos(normals_gt, sel_np)))
    v0 = jnp.take(verts_pred, edges_pred[:, 0], axis=1)
    v1 = jnp.take(verts_pred, edges_pred[:, 1], axis=1)
    edge = jnp.mean(jnp.sum((v0 - v1) ** 2, -1))
    return chamfer_weight * cham + normal_weight * norm + edge_weight * edge


if __name__ == "__main__":
    key = jax.random.PRNGKey(0)
    k1, k2, k3, k4, k5, k6 = jax.random.split(key, 6)

    # Small shapes that still exercise the padding masks (Pp, Pg not multiples of
    # 128) and the multi-tile running-min accumulation (Pg_pad / tile_pg = 2).
    N, Pp, Pg, V, E = 2, 100, 200, 64, 96

    def unit(v):
        return v / jnp.maximum(jnp.linalg.norm(v, axis=-1, keepdims=True), 1e-6)

    points_pred = jax.random.normal(k1, (N, Pp, 3), jnp.float32)
    normals_pred = unit(jax.random.normal(k2, (N, Pp, 3), jnp.float32))
    points_gt = jax.random.normal(k3, (N, Pg, 3), jnp.float32)
    normals_gt = unit(jax.random.normal(k4, (N, Pg, 3), jnp.float32))
    verts_pred = jax.random.normal(k5, (N, V, 3), jnp.float32)
    edges_pred = jax.random.randint(k6, (E, 2), 0, V, dtype=jnp.int32)

    # Default config: chamfer + edge only (normal path statically compiled out).
    total, losses = mesh_loss_forward(points_pred, normals_pred, points_gt, normals_gt,
                                      verts_pred, edges_pred, tile_pg=128)
    jax.block_until_ready(total)
    ref_total = mesh_loss_reference(points_pred, normals_pred, points_gt, normals_gt,
                                    verts_pred, edges_pred)
    assert jnp.allclose(total, ref_total, rtol=2e-3, atol=1e-4), (total, ref_total)

    # Non-default config exercising the normal-consistency kernel variant.
    total_n, _ = mesh_loss_forward(points_pred, normals_pred, points_gt, normals_gt,
                                   verts_pred, edges_pred, normal_weight=0.5)
    jax.block_until_ready(total_n)
    ref_total_n = mesh_loss_reference(points_pred, normals_pred, points_gt, normals_gt,
                                      verts_pred, edges_pred, normal_weight=0.5)
    assert jnp.allclose(total_n, ref_total_n, rtol=2e-3, atol=1e-4), (total_n, ref_total_n)

    print("KERNEL_OK")
</pallas_src>

<mosaic_0001>
module attributes {stable_mosaic.version = 11 : i64} {
  func.func @_chamfer_kernel(%arg0: i32, %arg1: i32, %arg2: memref<1x8x128xf32, #tpu.memory_space<vmem>>, %arg3: memref<1x8x128xf32, #tpu.memory_space<vmem>>, %arg4: memref<1x1x128xf32, #tpu.memory_space<vmem>>, %arg5: memref<1x128xf32, #tpu.memory_space<vmem>>, %arg6: memref<1x1xf32, #tpu.memory_space<vmem>>) attributes {dimension_semantics = [#tpu.dimension_semantics<parallel>, #tpu.dimension_semantics<arbitrary>], iteration_bounds = array<i64: 2, 2>, scalar_prefetch = 0 : i64, scratch_operands = 2 : i64, tpu.core_type = #tpu.core_type<tc>, window_params = [{transform_indices = @transform_0, window_bounds = array<i64: 1, 8, 128>}, {transform_indices = @transform_1, window_bounds = array<i64: 1, 8, 128>}, {transform_indices = @transform_2, window_bounds = array<i64: 1, 1, 128>}]} {
    %c0 = arith.constant 0 : index
    %c0_0 = arith.constant 0 : index
    %c0_1 = arith.constant 0 : index
    %0 = vector.load %arg2[%c0, %c0_0, %c0_1] : memref<1x8x128xf32, #tpu.memory_space<vmem>>, vector<1x8x128xf32>
    %1 = vector.shape_cast %0 : vector<1x8x128xf32> to vector<8x128xf32>
    %c0_2 = arith.constant 0 : index
    %c0_3 = arith.constant 0 : index
    %c0_4 = arith.constant 0 : index
    %2 = vector.load %arg3[%c0_2, %c0_3, %c0_4] : memref<1x8x128xf32, #tpu.memory_space<vmem>>, vector<1x8x128xf32>
    %3 = vector.shape_cast %2 : vector<1x8x128xf32> to vector<8x128xf32>
    %c0_i32 = arith.constant 0 : i32
    %4 = arith.cmpi eq, %arg1, %c0_i32 : i32
    %5 = arith.extui %4 : i1 to i32
    %c0_i32_5 = arith.constant 0 : i32
    %6 = arith.cmpi ne, %5, %c0_i32_5 : i32
    scf.if %6 {
      %cst_22 = arith.constant 1.000000e+30 : f32
      %44 = vector.broadcast %cst_22 : f32 to vector<1x128xf32>
      %c0_23 = arith.constant 0 : index
      %c0_24 = arith.constant 0 : index
      %45 = vector.load %arg5[%c0_23, %c0_24] : memref<1x128xf32, #tpu.memory_space<vmem>>, vector<1x128xf32>
      tpu.vector_store %arg5[%c0_23, %c0_24], %44 {strides = array<i32>} : memref<1x128xf32, #tpu.memory_space<vmem>>, vector<1x128xf32>,
      %cst_25 = arith.constant 0.000000e+00 : f32
      %46 = vector.broadcast %cst_25 : f32 to vector<1x1xf32>
      %c0_26 = arith.constant 0 : index
      %c0_27 = arith.constant 0 : index
      %47 = vector.load %arg6[%c0_26, %c0_27] : memref<1x1xf32, #tpu.memory_space<vmem>>, vector<1x1xf32>
      tpu.vector_store %arg6[%c0_26, %c0_27], %46 {strides = array<i32>} : memref<1x1xf32, #tpu.memory_space<vmem>>, vector<1x1xf32>,
    } else {
    }
    %cst = arith.constant dense<0.000000e+00> : vector<128x128xf32>
    %7 = tpu.matmul %3, %1, %cst {dimension_numbers = #tpu.dot_dimension_numbers<[0], [0], [1], [1], [0, 1, 1, 1], [], []>, precision = #tpu.contract_precision<fp32>} : vector<8x128xf32>, vector<8x128xf32>, vector<128x128xf32> -> vector<128x128xf32>
    %cst_6 = arith.constant 0.000000e+00 : f32
    %8 = vector.broadcast %cst_6 : f32 to vector<128x128xf32>
    %9 = arith.maximumf %7, %8 : vector<128x128xf32>
    %10 = tpu.iota {dimensions = array<i32: 1>} : vector<1x128xi32>
    %c100_i32 = arith.constant 100 : i32
    %11 = vector.broadcast %c100_i32 : i32 to vector<1x128xi32>
    %12 = arith.cmpi slt, %10, %11 : vector<1x128xi32>
    %13 = tpu.iota {dimensions = array<i32: 0>} : vector<128x1xi32>
    %c128_i32 = arith.constant 128 : i32
    %14 = arith.muli %arg1, %c128_i32 : i32
    %15 = vector.broadcast %14 : i32 to vector<128x1xi32>
    %16 = arith.addi %13, %15 : vector<128x1xi32>
    %c200_i32 = arith.constant 200 : i32
    %17 = vector.broadcast %c200_i32 : i32 to vector<128x1xi32>
    %18 = arith.cmpi slt, %16, %17 : vector<128x1xi32>
    %cst_7 = arith.constant 1.000000e+30 : f32
    %19 = vector.shape_cast %18 : vector<128x1xi1> to vector<128x1xi1>
    %20 = vector.broadcast %19 : vector<128x1xi1> to vector<128x128xi1>
    %21 = vector.broadcast %cst_7 : f32 to vector<128x128xf32>
    %22 = arith.select %20, %9, %21 : vector<128x128xi1>, vector<128x128xf32>
    %cst_8 = arith.constant 1.000000e+30 : f32
    %23 = vector.shape_cast %12 : vector<1x128xi1> to vector<1x128xi1>
    %24 = vector.broadcast %23 : vector<1x128xi1> to vector<128x128xi1>
    %25 = vector.broadcast %cst_8 : f32 to vector<128x128xf32>
    %26 = arith.select %24, %9, %25 : vector<128x128xi1>, vector<128x128xf32>
    %cst_9 = arith.constant dense<0x7F800000> : vector<128xf32>
    %27 = vector.multi_reduction <minimumf>, %22, %cst_9 [0] : vector<128x128xf32> to vector<128xf32>
    %28 = vector.shape_cast %27 : vector<128xf32> to vector<1x128xf32>
    %cst_10 = arith.constant dense<0x7F800000> : vector<128xf32>
    %29 = vector.multi_reduction <minimumf>, %26, %cst_10 [1] : vector<128x128xf32> to vector<128xf32>
    %30 = vector.shape_cast %29 : vector<128xf32> to vector<128x1xf32>
    %c0_11 = arith.constant 0 : index
    %c0_12 = arith.constant 0 : index
    %31 = vector.load %arg6[%c0_11, %c0_12] : memref<1x1xf32, #tpu.memory_space<vmem>>, vector<1x1xf32>
    %cst_13 = arith.constant 0.000000e+00 : f32
    %32 = vector.broadcast %cst_13 : f32 to vector<128x1xf32>
    %33 = arith.select %18, %30, %32 : vector<128x1xi1>, vector<128x1xf32>
    %cst_14 = arith.constant dense<0.000000e+00> : vector<1xf32>
    %34 = vector.multi_reduction <add>, %33, %cst_14 [0] : vector<128x1xf32> to vector<1xf32>
    %35 = vector.shape_cast %34 : vector<1xf32> to vector<1x1xf32>
    %36 = arith.addf %31, %35 : vector<1x1xf32>
    %c0_15 = arith.constant 0 : index
    %c0_16 = arith.constant 0 : index
    %37 = vector.load %arg6[%c0_15, %c0_16] : memref<1x1xf32, #tpu.memory_space<vmem>>, vector<1x1xf32>
    tpu.vector_store %arg6[%c0_15, %c0_16], %36 {strides = array<i32>} : memref<1x1xf32, #tpu.memory_space<vmem>>, vector<1x1xf32>,
    %c0_17 = arith.constant 0 : index
    %c0_18 = arith.constant 0 : index
    %38 = vector.load %arg5[%c0_17, %c0_18] : memref<1x128xf32, #tpu.memory_space<vmem>>, vector<1x128xf32>
    %39 = arith.minimumf %38, %28 : vector<1x128xf32>
    %c0_19 = arith.constant 0 : index
    %c0_20 = arith.constant 0 : index
    %40 = vector.load %arg5[%c0_19, %c0_20] : memref<1x128xf32, #tpu.memory_space<vmem>>, vector<1x128xf32>
    tpu.vector_store %arg5[%c0_19, %c0_20], %39 {strides = array<i32>} : memref<1x128xf32, #tpu.memory_space<vmem>>, vector<1x128xf32>,
    %c1_i32 = arith.constant 1 : i32
    %41 = arith.cmpi eq, %arg1, %c1_i32 : i32
    %42 = arith.extui %41 : i1 to i32
    %c0_i32_21 = arith.constant 0 : i32
    %43 = arith.cmpi ne, %42, %c0_i32_21 : i32
    scf.if %43 {
      %44 = tpu.iota {dimensions = array<i32: 2>} : vector<1x1x128xi32>
      %c0_22 = arith.constant 0 : index
      %c0_23 = arith.constant 0 : index
      %45 = vector.load %arg5[%c0_22, %c0_23] : memref<1x128xf32, #tpu.memory_space<vmem>>, vector<1x128xf32>
      %cst_24 = arith.constant 0.000000e+00 : f32
      %46 = vector.broadcast %cst_24 : f32 to vector<1x128xf32>
      %47 = arith.select %12, %45, %46 : vector<1x128xi1>, vector<1x128xf32>
      %48 = vector.shape_cast %47 : vector<1x128xf32> to vector<1x1x128xf32>
      %cst_25 = arith.constant dense<0.000000e+00> : vector<1xf32>
      %49 = vector.multi_reduction <add>, %48, %cst_25 [1, 2] : vector<1x1x128xf32> to vector<1xf32>
      %50 = vector.shape_cast %49 : vector<1xf32> to vector<1x1x1xf32>
      %51 = vector.extract %50[0, 0, 0] : f32 from vector<1x1x1xf32>
      %c0_26 = arith.constant 0 : index
      %c0_27 = arith.constant 0 : index
      %52 = vector.load %arg6[%c0_26, %c0_27] : memref<1x1xf32, #tpu.memory_space<vmem>>, vector<1x1xf32>
      %53 = vector.shape_cast %52 : vector<1x1xf32> to vector<1x1x1xf32>
      %cst_28 = arith.constant dense<0.000000e+00> : vector<1xf32>
      %54 = vector.multi_reduction <add>, %53, %cst_28 [1, 2] : vector<1x1x1xf32> to vector<1xf32>
      %55 = vector.shape_cast %54 : vector<1xf32> to vector<1x1x1xf32>
      %56 = vector.extract %55[0, 0, 0] : f32 from vector<1x1x1xf32>
      %c0_i32_29 = arith.constant 0 : i32
      %57 = vector.broadcast %c0_i32_29 : i32 to vector<1x1x128xi32>
      %58 = arith.cmpi eq, %44, %57 : vector<1x1x128xi32>
      %cst_30 = arith.constant 0.000000e+00 : f32
      %59 = vector.broadcast %51 : f32 to vector<1x1x128xf32>
      %60 = vector.broadcast %cst_30 : f32 to vector<1x1x128xf32>
      %61 = arith.select %58, %59, %60 : vector<1x1x128xi1>, vector<1x1x128xf32>
      %c1_i32_31 = arith.constant 1 : i32
      %62 = vector.broadcast %c1_i32_31 : i32 to vector<1x1x128xi32>
      %63 = arith.cmpi eq, %44, %62 : vector<1x1x128xi32>
      %cst_32 = arith.constant 0.000000e+00 : f32
      %64 = vector.broadcast %56 : f32 to vector<1x1x128xf32>
      %65 = vector.broadcast %cst_32 : f32 to vector<1x1x128xf32>
      %66 = arith.select %63, %64, %65 : vector<1x1x128xi1>, vector<1x1x128xf32>
      %67 = arith.addf %61, %66 : vector<1x1x128xf32>
      %c0_33 = arith.constant 0 : index
      %c0_34 = arith.constant 0 : index
      %c0_35 = arith.constant 0 : index
      %68 = vector.load %arg4[%c0_33, %c0_34, %c0_35] : memref<1x1x128xf32, #tpu.memory_space<vmem>>, vector<1x1x128xf32>
      tpu.vector_store %arg4[%c0_33, %c0_34, %c0_35], %67 {strides = array<i32>} : memref<1x1x128xf32, #tpu.memory_space<vmem>>, vector<1x1x128xf32>,
    } else {
    }
    return
  }
  func.func @transform_0(%arg0: i32, %arg1: i32) -> (i32, i32, i32) {
    %c0_i32 = arith.constant 0 : i32
    %c0_i32_0 = arith.constant 0 : i32
    %c0_i32_1 = arith.constant 0 : i32
    return %arg0, %c0_i32, %c0_i32_0 : i32, i32, i32
  }
  func.func @transform_1(%arg0: i32, %arg1: i32) -> (i32, i32, i32) {
    %c0_i32 = arith.constant 0 : i32
    %c0_i32_0 = arith.constant 0 : i32
    return %arg0, %c0_i32, %arg1 : i32, i32, i32
  }
  func.func @transform_2(%arg0: i32, %arg1: i32) -> (i32, i32, i32) {
    %c0_i32 = arith.constant 0 : i32
    %c0_i32_0 = arith.constant 0 : i32
    %c0_i32_1 = arith.constant 0 : i32
    return %arg0, %c0_i32, %c0_i32_0 : i32, i32, i32
  }
}

</mosaic_0001>

<llo_original>
// kernel: mesh_loss_forward.1
$region0: #{mesh_loss_forward.1}
  #allocation0 [shape = 'u32[]', space=smem, size = 0x4, offset = 0x4, fixed_abs, tag = 'smem constant byte address 0x4 - core index']
  #allocation1 [shape = 'u32[72,128]{1,0:T(1,128)}', space=vmem, size = 0x9000, scoped, tag = 'internal scratch']
  #allocation2 [shape = 'f32[1,128]{1,0:T(1,128)}', space=vmem, size = 0x200, scoped, tag = 'scratch operand']
  #allocation3 [shape = 'f32[1,1]{1,0:T(1,128)}', space=vmem, size = 0x200, scoped, tag = 'scratch operand']
  %s0 = inlined_call_operand.vmem [shape: f32[2,8,128], index: 0, kind: input, shape index: {}]
  %s1 = inlined_call_operand.vmem [shape: f32[2,8,256], index: 1, kind: input, shape index: {}]
  %s2 = inlined_call_operand.vmem [shape: f32[2,1,128], index: 2, kind: output, shape index: {}]
  %s3 = sld [smem:[#allocation0]]
  $region49: #{mesh_loss_forward.1} parent=0
    _
  %s5 = ssub.s32 1, %s3
  %s6 = scalar_select 0, %s5, %s3
  loop: start=0, step=1, limit=6
  $region2: #{mesh_loss_forward.1} parent=0 // loop_pre_header
    _
  $region3: #{mesh_loss_forward.1} parent=0 // loop_header
    %s8 = sphi 0, %s12
    %p9 = scmp.ge.s32.totalorder %s8, 6
    %s15 = sphi 0, %s27
    %s16 = sphi 0, %s23
    %s17 = sphi 0, %s15
    %s18 = sphi 0, %s16
    %s19 = sphi 0, %s17
    %s20 = sphi 0, %s18
    %s30 = sphi 0, %s32
    %s33 = sphi 0, %s30
    %s34 = sphi 0, %s33
    %s50 = sphi 0, %s34
    %s58 = sphi 0, %s60
    %s61 = sphi 0, %s58
    %s62 = sphi 0, %s61
    %s78 = sphi 0, %s62
    %s84 = sphi 0, %s86
    %s87 = sphi 0, %s84
    %s88 = sphi 0, %s87
    %s104 = sphi 0, %s88
  $region4: #{mesh_loss_forward.1} parent=0 // loop_header_branch
    %11 = sbr.rel (%p9) target = $region8
  $region5: #{mesh_loss_forward.1} parent=0 // loop_body
    %s13 = ssub.s32 %s8, 1
    %s14 = ssub.s32 %s8, 2
    %s21 = sadd.s32 1, %s16
    %p22 = scmp.ge.s32.totalorder %s21, 2
    %s23 = scalar_select %p22, 0, %s21
    %s24 = sadd.s32 1, %s15
    %s25 = scalar_select %p22, %s24, %s15
    %p26 = scmp.ge.s32.totalorder %s25, 2
    %s27 = scalar_select %p26, 0, %s25
    %s28 = ssub.s32 %s15, %s27
    %p29 = scmp.eq.s32.totalorder %s28, 0
    %s31 = sadd.s32 %s30, 1
    %s32 = scalar_select %p29, %s30, %s31
    %p35 = pneg %p29
    %p36 = scmp.eq.s32.totalorder %s8, 3
    %p37 = por %p35, %p36
    %p38 = scmp.ne.s32.totalorder %s30, %s33
    %p39 = scmp.eq.s32.totalorder %s8, 0
    %p40 = por %p38, %p39
    %p41 = scmp.ne.s32.totalorder %s30, %s33
    %p42 = scmp.eq.s32.totalorder %s13, 3
    %p43 = por %p41, %p42
    %p44 = scmp.ne.s32.totalorder %s33, %s34
    %p45 = scmp.eq.s32.totalorder %s13, 0
    %p46 = por %p44, %p45
    %p47 = scmp.ne.s32.totalorder %s33, %s34
    %p48 = scmp.eq.s32.totalorder %s14, 3
    %p49 = por %p47, %p48
    %p51 = scmp.ne.s32.totalorder %s34, %s50
    %p52 = scmp.eq.s32.totalorder %s14, 0
    %p53 = por %p51, %p52
    %s54 = ssub.s32 %s15, %s27
    %s55 = ssub.s32 %s16, %s23
    %s56 = sor.u32 %s54, %s55
    %p57 = scmp.eq.s32.totalorder %s56, 0
    %s59 = sadd.s32 %s58, 1
    %s60 = scalar_select %p57, %s58, %s59
    %p63 = pneg %p57
    %p64 = scmp.eq.s32.totalorder %s8, 3
    %p65 = por %p63, %p64
    %p66 = scmp.ne.s32.totalorder %s58, %s61
    %p67 = scmp.eq.s32.totalorder %s8, 0
    %p68 = por %p66, %p67
    %p69 = scmp.ne.s32.totalorder %s58, %s61
    %p70 = scmp.eq.s32.totalorder %s13, 3
    %p71 = por %p69, %p70
    %p72 = scmp.ne.s32.totalorder %s61, %s62
    %p73 = scmp.eq.s32.totalorder %s13, 0
    %p74 = por %p72, %p73
    %p75 = scmp.ne.s32.totalorder %s61, %s62
    %p76 = scmp.eq.s32.totalorder %s14, 3
    %p77 = por %p75, %p76
    %p79 = scmp.ne.s32.totalorder %s62, %s78
    %p80 = scmp.eq.s32.totalorder %s14, 0
    %p81 = por %p79, %p80
    %s82 = ssub.s32 %s15, %s27
    %p83 = scmp.eq.s32.totalorder %s82, 0
    %s85 = sadd.s32 %s84, 1
    %s86 = scalar_select %p83, %s84, %s85
    %p89 = pneg %p83
    %p90 = scmp.eq.s32.totalorder %s8, 3
    %p91 = por %p89, %p90
    %p92 = scmp.ne.s32.totalorder %s84, %s87
    %p93 = scmp.eq.s32.totalorder %s8, 0
    %p94 = por %p92, %p93
    %p95 = scmp.ne.s32.totalorder %s84, %s87
    %p96 = scmp.eq.s32.totalorder %s13, 3
    %p97 = por %p95, %p96
    %p98 = scmp.ne.s32.totalorder %s87, %s88
    %p99 = scmp.eq.s32.totalorder %s13, 0
    %p100 = por %p98, %p99
    %p101 = scmp.ne.s32.totalorder %s87, %s88
    %p102 = scmp.eq.s32.totalorder %s14, 3
    %p103 = por %p101, %p102
    %p105 = scmp.ne.s32.totalorder %s88, %s104
    %p106 = scmp.eq.s32.totalorder %s14, 0
    %p107 = por %p105, %p106
    %p108 = scmp.le.s32.totalorder 1, %s8
    %p109 = scmp.lt.s32.totalorder %s8, 5
    %p110 = pnand %p108, %p109
    %p111 = pneg %p110
    // Predicated region
    $region9: #{mesh_loss_forward.1} parent=5 // pred_check
      _
    $region10: #{mesh_loss_forward.1} parent=5 // pred_check_branch
      %113 = sbr.rel (%p110) target = $region12
    $region11: #{mesh_loss_forward.1} parent=5 // pred_region
      %s114 = ssub.s32 %s8, 1
    $region12: #{mesh_loss_forward.1} parent=5 // pred_fallthru
      _
    %p115 = scmp.lt.s32.totalorder %s8, 4
    // Predicated region
    $region13: #{mesh_loss_forward.1} parent=5 // pred_check
      %p116 = pneg %p115
    $region14: #{mesh_loss_forward.1} parent=5 // pred_check_branch
      %118 = sbr.rel (%p116) target = $region16
    $region15: #{mesh_loss_forward.1} parent=5 // pred_region
      // Predicated region
      $region17: #{mesh_loss_forward.1} parent=15 // pred_check
        %p119 = pneg %p40
      $region18: #{mesh_loss_forward.1} parent=15 // pred_check_branch
        %121 = sbr.rel (%p119) target = $region20
      $region19: #{mesh_loss_forward.1} parent=15 // pred_region
        %p122 = scmp.lt.s32.totalorder %s15, 1
        %s123 = scalar_select %p122, %s15, 1
        %s124 = smul.addr %s123, 8
        %s125 = scalar_lea.vmem %s0, %s124
      $region20: #{mesh_loss_forward.1} parent=15 // pred_fallthru
        _
      // Predicated region
      $region21: #{mesh_loss_forward.1} parent=15 // pred_check
        %p126 = pneg %p68
      $region22: #{mesh_loss_forward.1} parent=15 // pred_check_branch
        %128 = sbr.rel (%p126) target = $region24
      $region23: #{mesh_loss_forward.1} parent=15 // pred_region
        %p129 = scmp.lt.s32.totalorder %s15, 1
        %s130 = scalar_select %p129, %s15, 1
        %p131 = scmp.lt.s32.totalorder %s16, 1
        %s132 = scalar_select %p131, %s16, 1
        %s133 = smul.addr %s130, 2
        %s134 = sadd.s32 %s132, %s133
        %s135 = smul.addr %s134, 8
        %s136 = scalar_lea.vmem %s1, %s135
      $region24: #{mesh_loss_forward.1} parent=15 // pred_fallthru
        _
    $region16: #{mesh_loss_forward.1} parent=5 // pred_fallthru
      _
    %p137 = scmp.le.s32.totalorder 1, %s8
    %p138 = scmp.lt.s32.totalorder %s8, 5
    %p139 = pnand %p137, %p138
    %p140 = pneg %p139
    // Predicated region
    $region25: #{mesh_loss_forward.1} parent=5 // pred_check
      _
    $region26: #{mesh_loss_forward.1} parent=5 // pred_check_branch
      %142 = sbr.rel (%p139) target = $region28
    $region27: #{mesh_loss_forward.1} parent=5 // pred_region
      %s143 = ssub.s32 %s8, 1
      %p144 = scmp.lt.s32.totalorder %s17, 1
      %s145 = scalar_select %p144, %s17, 1
      %s146 = smul.addr %s145, 8
      %s147 = scalar_lea.vmem %s0, %s146
      %p148 = pneg %p46
      %p149 = pneg %p43
      %p150 = scmp.lt.s32.totalorder %s17, 1
      %s151 = scalar_select %p150, %s17, 1
      %p152 = scmp.lt.s32.totalorder %s18, 1
      %s153 = scalar_select %p152, %s18, 1
      %s154 = smul.addr %s151, 2
      %s155 = sadd.s32 %s153, %s154
      %s156 = smul.addr %s155, 8
      %s157 = scalar_lea.vmem %s1, %s156
      %p158 = pneg %p74
      %p159 = pneg %p71
      %p160 = pneg %p100
      %p161 = pneg %p97
      %p162 = scmp.lt.s32.totalorder %s17, 1
      %s163 = scalar_select %p162, %s17, 1
      %s164 = scalar_lea.vmem %s2, %s163
      %p165 = scmp.lt.s32.totalorder %s17, 1
      %s166 = scalar_select %p165, %s17, 1
      %s167 = smul.addr %s166, 8
      %s168 = scalar_lea.vmem %s0, %s167
      %p169 = scmp.lt.s32.totalorder %s17, 1
      %s170 = scalar_select %p169, %s17, 1
      %p171 = scmp.lt.s32.totalorder %s18, 1
      %s172 = scalar_select %p171, %s18, 1
      %s173 = smul.addr %s170, 2
      %s174 = sadd.s32 %s172, %s173
      %s175 = smul.addr %s174, 8
      %s176 = scalar_lea.vmem %s1, %s175
      %p177 = scmp.lt.s32.totalorder %s17, 1
      %s178 = scalar_select %p177, %s17, 1
      %s179 = scalar_lea.vmem %s2, %s178
      %v180 = vld [vmem:[%s168] sm:$0xff]
      %v181 = vld [vmem:[%s176] sm:$0xff]
      %p182 = scmp.eq.s32.totalorder %s18, 0
      // Predicated region
      $region29: #{mesh_loss_forward.1} parent=27 // pred_check
        %p183 = pneg %p182
      $region30: #{mesh_loss_forward.1} parent=27 // pred_check_branch
        %185 = sbr.rel (%p183) target = $region32
      $region31: #{mesh_loss_forward.1} parent=27 // pred_region
        %186 = vst [vmem:[#allocation2] sm:$0x1] 1e+30
        %vm187 = vcmask 0
        %188 = vst.msk [vmem:[#allocation3] sm:$0x1] %vm187, 0.0
      $region32: #{mesh_loss_forward.1} parent=27 // pred_fallthru
        _
      %189 = vxpose.xlu0.b32.start [1/16] %v181, 128
      %190 = vxpose.xlu0.b32.cont [2/16] 0.0, 128
      %191 = vxpose.xlu0.b32.cont [3/16] 0.0, 128
      %192 = vxpose.xlu0.b32.cont [4/16] 0.0, 128
      %193 = vxpose.xlu0.b32.cont [5/16] 0.0, 128
      %194 = vxpose.xlu0.b32.cont [6/16] 0.0, 128
      %195 = vxpose.xlu0.b32.cont [7/16] 0.0, 128
      %196 = vxpose.xlu0.b32.cont [8/16] 0.0, 128
      %197 = vxpose.xlu0.b32.cont [9/16] 0.0, 128
      %198 = vxpose.xlu0.b32.cont [10/16] 0.0, 128
      %199 = vxpose.xlu0.b32.cont [11/16] 0.0, 128
      %200 = vxpose.xlu0.b32.cont [12/16] 0.0, 128
      %201 = vxpose.xlu0.b32.cont [13/16] 0.0, 128
      %202 = vxpose.xlu0.b32.cont [14/16] 0.0, 128
      %203 = vxpose.xlu0.b32.cont [15/16] 0.0, 128
      %204 = vxpose.xlu0.b32.end [16/16] 0.0, 128
      %v205 = vpop.trf.xlu0
      %v206 = vpop.trf.xlu0
      %v207 = vpop.trf.xlu0
      %v208 = vpop.trf.xlu0
      %v209 = vpop.trf.xlu0
      %v210 = vpop.trf.xlu0
      %v211 = vpop.trf.xlu0
      %v212 = vpop.trf.xlu0
      %v213 = vpop.trf.xlu0
      %v214 = vpop.trf.xlu0
      %v215 = vpop.trf.xlu0
      %v216 = vpop.trf.xlu0
      %v217 = vpop.trf.xlu0
      %v218 = vpop.trf.xlu0
      %v219 = vpop.trf.xlu0
      %v220 = vpop.trf.xlu0
      %vm221 = vcmask 64512
      %v223 = vsel %vm221, %v205, 0
      %v226 = vsel %vm221, %v206, 0
      %v229 = vsel %vm221, %v207, 0
      %v232 = vsel %vm221, %v208, 0
      %v235 = vsel %vm221, %v209, 0
      %v238 = vsel %vm221, %v210, 0
      %v241 = vsel %vm221, %v211, 0
      %v244 = vsel %vm221, %v212, 0
      %v247 = vsel %vm221, %v213, 0
      %v250 = vsel %vm221, %v214, 0
      %v253 = vsel %vm221, %v215, 0
      %v256 = vsel %vm221, %v216, 0
      %v259 = vsel %vm221, %v217, 0
      %v262 = vsel %vm221, %v218, 0
      %v265 = vsel %vm221, %v219, 0
      %v268 = vsel %vm221, %v220, 0
      %270 = vmatpush.msra.mxu0 0.0
      %271 = vmatpush.msra.mxu0 0.0
      %272 = vmatpush.msra.mxu0 0.0
      %273 = vmatpush.msra.mxu0 0.0
      %274 = vmatpush.msra.mxu0 0.0
      %275 = vmatpush.msra.mxu0 0.0
      %276 = vmatpush.msra.mxu0 0.0
      %277 = vmatpush.msra.mxu0 0.0
      %278 = vmatpush.msra.mxu0 0.0
      %279 = vmatpush.msra.mxu0 0.0
      %280 = vmatpush.msra.mxu0 0.0
      %281 = vmatpush.msra.mxu0 0.0
      %282 = vmatpush.msra.mxu0 0.0
      %283 = vmatpush.msra.mxu0 0.0
      %284 = vmatpush.msra.mxu0 0.0
      %v285 = vand.u32 %v180, 4294901760
      %286 = vmatpush.msra.mxu0 %v285
      %v287 = vand.u32 %v223, 4294901760
      %v288 = vsub.f32 %v223, %v287
      %v289 = vand.u32 %v288, 4294901760
      %v290 = vsub.f32 %v288, %v289
      %v291 = vand.u32 %v290, 4294901760
      %292 = vmatmul.f32.gmra.mxu0 %v291
      %v293 = vpop.f32.mrf.mxu0
      %v294 = vadd.f32 0.0, %v293
      %v295 = vand.u32 %v226, 4294901760
      %v296 = vsub.f32 %v226, %v295
      %v297 = vand.u32 %v296, 4294901760
      %v298 = vsub.f32 %v296, %v297
      %v299 = vand.u32 %v298, 4294901760
      %300 = vmatmul.f32.gmra.mxu0 %v299
      %v301 = vpop.f32.mrf.mxu0
      %v302 = vadd.f32 0.0, %v301
      %v303 = vand.u32 %v229, 4294901760
      %v304 = vsub.f32 %v229, %v303
      %v305 = vand.u32 %v304, 4294901760
      %v306 = vsub.f32 %v304, %v305
      %v307 = vand.u32 %v306, 4294901760
      %308 = vmatmul.f32.gmra.mxu0 %v307
      %v309 = vpop.f32.mrf.mxu0
      %v310 = vadd.f32 0.0, %v309
      %v311 = vand.u32 %v232, 4294901760
      %v312 = vsub.f32 %v232, %v311
      %v313 = vand.u32 %v312, 4294901760
      %v314 = vsub.f32 %v312, %v313
      %v315 = vand.u32 %v314, 4294901760
      %316 = vmatmul.f32.gmra.mxu0 %v315
      %v317 = vpop.f32.mrf.mxu0
      %v318 = vadd.f32 0.0, %v317
      %v319 = vand.u32 %v235, 4294901760
      %v320 = vsub.f32 %v235, %v319
      %v321 = vand.u32 %v320, 4294901760
      %v322 = vsub.f32 %v320, %v321
      %v323 = vand.u32 %v322, 4294901760
      %324 = vmatmul.f32.gmra.mxu0 %v323
      %v325 = vpop.f32.mrf.mxu0
      %v326 = vadd.f32 0.0, %v325
      %v327 = vand.u32 %v238, 4294901760
      %v328 = vsub.f32 %v238, %v327
      %v329 = vand.u32 %v328, 4294901760
      %v330 = vsub.f32 %v328, %v329
      %v331 = vand.u32 %v330, 4294901760
      %332 = vmatmul.f32.gmra.mxu0 %v331
      %v333 = vpop.f32.mrf.mxu0
      %v334 = vadd.f32 0.0, %v333
      %v335 = vand.u32 %v241, 4294901760
      %v336 = vsub.f32 %v241, %v335
      %v337 = vand.u32 %v336, 4294901760
      %v338 = vsub.f32 %v336, %v337
      %v339 = vand.u32 %v338, 4294901760
      %340 = vmatmul.f32.gmra.mxu0 %v339
      %v341 = vpop.f32.mrf.mxu0
      %v342 = vadd.f32 0.0, %v341
      %v343 = vand.u32 %v244, 4294901760
      %v344 = vsub.f32 %v244, %v343
      %v345 = vand.u32 %v344, 4294901760
      %v346 = vsub.f32 %v344, %v345
      %v347 = vand.u32 %v346, 4294901760
      %348 = vmatmul.f32.gmra.mxu0 %v347
      %v349 = vpop.f32.mrf.mxu0
      %v350 = vadd.f32 0.0, %v349
      %v351 = vand.u32 %v247, 4294901760
      %v352 = vsub.f32 %v247, %v351
      %v353 = vand.u32 %v352, 4294901760
      %v354 = vsub.f32 %v352, %v353
      %v355 = vand.u32 %v354, 4294901760
      %356 = vmatmul.f32.gmra.mxu0 %v355
      %v357 = vpop.f32.mrf.mxu0
      %v358 = vadd.f32 0.0, %v357
      %v359 = vand.u32 %v250, 4294901760
      %v360 = vsub.f32 %v250, %v359
      %v361 = vand.u32 %v360, 4294901760
      %v362 = vsub.f32 %v360, %v361
      %v363 = vand.u32 %v362, 4294901760
      %364 = vmatmul.f32.gmra.mxu0 %v363
      %v365 = vpop.f32.mrf.mxu0
      %v366 = vadd.f32 0.0, %v365
      %v367 = vand.u32 %v253, 4294901760
      %v368 = vsub.f32 %v253, %v367
      %v369 = vand.u32 %v368, 4294901760
      %v370 = vsub.f32 %v368, %v369
      %v371 = vand.u32 %v370, 4294901760
      %372 = vmatmul.f32.gmra.mxu0 %v371
      %v373 = vpop.f32.mrf.mxu0
      %v374 = vadd.f32 0.0, %v373
      %v375 = vand.u32 %v256, 4294901760
      %v376 = vsub.f32 %v256, %v375
      %v377 = vand.u32 %v376, 4294901760
      %v378 = vsub.f32 %v376, %v377
      %v379 = vand.u32 %v378, 4294901760
      %380 = vmatmul.f32.gmra.mxu0 %v379
      %v381 = vpop.f32.mrf.mxu0
      %v382 = vadd.f32 0.0, %v381
      %v383 = vand.u32 %v259, 4294901760
      %v384 = vsub.f32 %v259, %v383
      %v385 = vand.u32 %v384, 4294901760
      %v386 = vsub.f32 %v384, %v385
      %v387 = vand.u32 %v386, 4294901760
      %388 = vmatmul.f32.gmra.mxu0 %v387
      %v389 = vpop.f32.mrf.mxu0
      %v390 = vadd.f32 0.0, %v389
      %v391 = vand.u32 %v262, 4294901760
      %v392 = vsub.f32 %v262, %v391
      %v393 = vand.u32 %v392, 4294901760
      %v394 = vsub.f32 %v392, %v393
      %v395 = vand.u32 %v394, 4294901760
      %396 = vmatmul.f32.gmra.mxu0 %v395
      %v397 = vpop.f32.mrf.mxu0
      %v398 = vadd.f32 0.0, %v397
      %v399 = vand.u32 %v265, 4294901760
      %v400 = vsub.f32 %v265, %v399
      %v401 = vand.u32 %v400, 4294901760
      %v402 = vsub.f32 %v400, %v401
      %v403 = vand.u32 %v402, 4294901760
      %404 = vmatmul.f32.gmra.mxu0 %v403
      %v405 = vpop.f32.mrf.mxu0
      %v406 = vadd.f32 0.0, %v405
      %v407 = vand.u32 %v268, 4294901760
      %v408 = vsub.f32 %v268, %v407
      %v409 = vand.u32 %v408, 4294901760
      %v410 = vsub.f32 %v408, %v409
      %v411 = vand.u32 %v410, 4294901760
      %412 = vmatmul.f32.gmra.mxu0 %v411
      %v413 = vpop.f32.mrf.mxu0
      %v414 = vadd.f32 0.0, %v413
      %415 = vdwg.mxu0
      %416 = vmatpush.msra.mxu0 0.0
      %417 = vmatpush.msra.mxu0 0.0
      %418 = vmatpush.msra.mxu0 0.0
      %419 = vmatpush.msra.mxu0 0.0
      %420 = vmatpush.msra.mxu0 0.0
      %421 = vmatpush.msra.mxu0 0.0
      %422 = vmatpush.msra.mxu0 0.0
      %423 = vmatpush.msra.mxu0 0.0
      %424 = vmatpush.msra.mxu0 0.0
      %425 = vmatpush.msra.mxu0 0.0
      %426 = vmatpush.msra.mxu0 0.0
      %427 = vmatpush.msra.mxu0 0.0
      %428 = vmatpush.msra.mxu0 0.0
      %429 = vmatpush.msra.mxu0 0.0
      %430 = vmatpush.msra.mxu0 0.0
      %v431 = vand.u32 %v180, 4294901760
      %v432 = vsub.f32 %v180, %v431
      %v433 = vand.u32 %v432, 4294901760
      %v434 = vsub.f32 %v432, %v433
      %v435 = vand.u32 %v434, 4294901760
      %436 = vmatpush.msra.mxu0 %v435
      %v437 = vand.u32 %v223, 4294901760
      %438 = vmatmul.f32.gmra.mxu0 %v437
      %v439 = vpop.f32.mrf.mxu0
      %v440 = vadd.f32 %v294, %v439
      %v441 = vand.u32 %v226, 4294901760
      %442 = vmatmul.f32.gmra.mxu0 %v441
      %v443 = vpop.f32.mrf.mxu0
      %v444 = vadd.f32 %v302, %v443
      %v445 = vand.u32 %v229, 4294901760
      %446 = vmatmul.f32.gmra.mxu0 %v445
      %v447 = vpop.f32.mrf.mxu0
      %v448 = vadd.f32 %v310, %v447
      %v449 = vand.u32 %v232, 4294901760
      %450 = vmatmul.f32.gmra.mxu0 %v449
      %v451 = vpop.f32.mrf.mxu0
      %v452 = vadd.f32 %v318, %v451
      %v453 = vand.u32 %v235, 4294901760
      %454 = vmatmul.f32.gmra.mxu0 %v453
      %v455 = vpop.f32.mrf.mxu0
      %v456 = vadd.f32 %v326, %v455
      %v457 = vand.u32 %v238, 4294901760
      %458 = vmatmul.f32.gmra.mxu0 %v457
      %v459 = vpop.f32.mrf.mxu0
      %v460 = vadd.f32 %v334, %v459
      %v461 = vand.u32 %v241, 4294901760
      %462 = vmatmul.f32.gmra.mxu0 %v461
      %v463 = vpop.f32.mrf.mxu0
      %v464 = vadd.f32 %v342, %v463
      %v465 = vand.u32 %v244, 4294901760
      %466 = vmatmul.f32.gmra.mxu0 %v465
      %v467 = vpop.f32.mrf.mxu0
      %v468 = vadd.f32 %v350, %v467
      %v469 = vand.u32 %v247, 4294901760
      %470 = vmatmul.f32.gmra.mxu0 %v469
      %v471 = vpop.f32.mrf.mxu0
      %v472 = vadd.f32 %v358, %v471
      %v473 = vand.u32 %v250, 4294901760
      %474 = vmatmul.f32.gmra.mxu0 %v473
      %v475 = vpop.f32.mrf.mxu0
      %v476 = vadd.f32 %v366, %v475
      %v477 = vand.u32 %v253, 4294901760
      %478 = vmatmul.f32.gmra.mxu0 %v477
      %v479 = vpop.f32.mrf.mxu0
      %v480 = vadd.f32 %v374, %v479
      %v481 = vand.u32 %v256, 4294901760
      %482 = vmatmul.f32.gmra.mxu0 %v481
      %v483 = vpop.f32.mrf.mxu0
      %v484 = vadd.f32 %v382, %v483
      %v485 = vand.u32 %v259, 4294901760
      %486 = vmatmul.f32.gmra.mxu0 %v485
      %v487 = vpop.f32.mrf.mxu0
      %v488 = vadd.f32 %v390, %v487
      %v489 = vand.u32 %v262, 4294901760
      %490 = vmatmul.f32.gmra.mxu0 %v489
      %v491 = vpop.f32.mrf.mxu0
      %v492 = vadd.f32 %v398, %v491
      %v493 = vand.u32 %v265, 4294901760
      %494 = vmatmul.f32.gmra.mxu0 %v493
      %v495 = vpop.f32.mrf.mxu0
      %v496 = vadd.f32 %v406, %v495
      %v497 = vand.u32 %v268, 4294901760
      %498 = vmatmul.f32.gmra.mxu0 %v497
      %v499 = vpop.f32.mrf.mxu0
      %v500 = vadd.f32 %v414, %v499
      %501 = vdwg.mxu0
      %502 = vmatpush.msra.mxu0 0.0
      %503 = vmatpush.msra.mxu0 0.0
      %504 = vmatpush.msra.mxu0 0.0
      %505 = vmatpush.msra.mxu0 0.0
      %506 = vmatpush.msra.mxu0 0.0
      %507 = vmatpush.msra.mxu0 0.0
      %508 = vmatpush.msra.mxu0 0.0
      %509 = vmatpush.msra.mxu0 0.0
      %510 = vmatpush.msra.mxu0 0.0
      %511 = vmatpush.msra.mxu0 0.0
      %512 = vmatpush.msra.mxu0 0.0
      %513 = vmatpush.msra.mxu0 0.0
      %514 = vmatpush.msra.mxu0 0.0
      %515 = vmatpush.msra.mxu0 0.0
      %516 = vmatpush.msra.mxu0 0.0
      %v517 = vand.u32 %v180, 4294901760
      %v518 = vsub.f32 %v180, %v517
      %519 = vmatpush.msra.mxu0 %v518
      %v520 = vand.u32 %v223, 4294901760
      %v521 = vsub.f32 %v223, %v520
      %522 = vmatmul.f32.gmra.mxu0 %v521
      %v523 = vpop.f32.mrf.mxu0
      %v524 = vadd.f32 %v440, %v523
      %v525 = vand.u32 %v226, 4294901760
      %v526 = vsub.f32 %v226, %v525
      %527 = vmatmul.f32.gmra.mxu0 %v526
      %v528 = vpop.f32.mrf.mxu0
      %v529 = vadd.f32 %v444, %v528
      %v530 = vand.u32 %v229, 4294901760
      %v531 = vsub.f32 %v229, %v530
      %532 = vmatmul.f32.gmra.mxu0 %v531
      %v533 = vpop.f32.mrf.mxu0
      %v534 = vadd.f32 %v448, %v533
      %v535 = vand.u32 %v232, 4294901760
      %v536 = vsub.f32 %v232, %v535
      %537 = vmatmul.f32.gmra.mxu0 %v536
      %v538 = vpop.f32.mrf.mxu0
      %v539 = vadd.f32 %v452, %v538
      %v540 = vand.u32 %v235, 4294901760
      %v541 = vsub.f32 %v235, %v540
      %542 = vmatmul.f32.gmra.mxu0 %v541
      %v543 = vpop.f32.mrf.mxu0
      %v544 = vadd.f32 %v456, %v543
      %v545 = vand.u32 %v238, 4294901760
      %v546 = vsub.f32 %v238, %v545
      %547 = vmatmul.f32.gmra.mxu0 %v546
      %v548 = vpop.f32.mrf.mxu0
      %v549 = vadd.f32 %v460, %v548
      %v550 = vand.u32 %v241, 4294901760
      %v551 = vsub.f32 %v241, %v550
      %552 = vmatmul.f32.gmra.mxu0 %v551
      %v553 = vpop.f32.mrf.mxu0
      %v554 = vadd.f32 %v464, %v553
      %v555 = vand.u32 %v244, 4294901760
      %v556 = vsub.f32 %v244, %v555
      %557 = vmatmul.f32.gmra.mxu0 %v556
      %v558 = vpop.f32.mrf.mxu0
      %v559 = vadd.f32 %v468, %v558
      %v560 = vand.u32 %v247, 4294901760
      %v561 = vsub.f32 %v247, %v560
      %562 = vmatmul.f32.gmra.mxu0 %v561
      %v563 = vpop.f32.mrf.mxu0
      %v564 = vadd.f32 %v472, %v563
      %v565 = vand.u32 %v250, 4294901760
      %v566 = vsub.f32 %v250, %v565
      %567 = vmatmul.f32.gmra.mxu0 %v566
      %v568 = vpop.f32.mrf.mxu0
      %v569 = vadd.f32 %v476, %v568
      %v570 = vand.u32 %v253, 4294901760
      %v571 = vsub.f32 %v253, %v570
      %572 = vmatmul.f32.gmra.mxu0 %v571
      %v573 = vpop.f32.mrf.mxu0
      %v574 = vadd.f32 %v480, %v573
      %v575 = vand.u32 %v256, 4294901760
      %v576 = vsub.f32 %v256, %v575
      %577 = vmatmul.f32.gmra.mxu0 %v576
      %v578 = vpop.f32.mrf.mxu0
      %v579 = vadd.f32 %v484, %v578
      %v580 = vand.u32 %v259, 4294901760
      %v581 = vsub.f32 %v259, %v580
      %582 = vmatmul.f32.gmra.mxu0 %v581
      %v583 = vpop.f32.mrf.mxu0
      %v584 = vadd.f32 %v488, %v583
      %v585 = vand.u32 %v262, 4294901760
      %v586 = vsub.f32 %v262, %v585
      %587 = vmatmul.f32.gmra.mxu0 %v586
      %v588 = vpop.f32.mrf.mxu0
      %v589 = vadd.f32 %v492, %v588
      %v590 = vand.u32 %v265, 4294901760
      %v591 = vsub.f32 %v265, %v590
      %592 = vmatmul.f32.gmra.mxu0 %v591
      %v593 = vpop.f32.mrf.mxu0
      %v594 = vadd.f32 %v496, %v593
      %v595 = vand.u32 %v268, 4294901760
      %v596 = vsub.f32 %v268, %v595
      %597 = vmatmul.f32.gmra.mxu0 %v596
      %v598 = vpop.f32.mrf.mxu0
      %v599 = vadd.f32 %v500, %v598
      %600 = vdwg.mxu0
      %601 = vmatpush.msra.mxu0 0.0
      %602 = vmatpush.msra.mxu0 0.0
      %603 = vmatpush.msra.mxu0 0.0
      %604 = vmatpush.msra.mxu0 0.0
      %605 = vmatpush.msra.mxu0 0.0
      %606 = vmatpush.msra.mxu0 0.0
      %607 = vmatpush.msra.mxu0 0.0
      %608 = vmatpush.msra.mxu0 0.0
      %609 = vmatpush.msra.mxu0 0.0
      %610 = vmatpush.msra.mxu0 0.0
      %611 = vmatpush.msra.mxu0 0.0
      %612 = vmatpush.msra.mxu0 0.0
      %613 = vmatpush.msra.mxu0 0.0
      %614 = vmatpush.msra.mxu0 0.0
      %615 = vmatpush.msra.mxu0 0.0
      %v616 = vand.u32 %v180, 4294901760
      %617 = vmatpush.msra.mxu0 %v616
      %v618 = vand.u32 %v223, 4294901760
      %v619 = vsub.f32 %v223, %v618
      %v620 = vand.u32 %v619, 4294901760
      %621 = vmatmul.f32.gmra.mxu0 %v620
      %v622 = vpop.f32.mrf.mxu0
      %v623 = vadd.f32 %v524, %v622
      %v624 = vand.u32 %v226, 4294901760
      %v625 = vsub.f32 %v226, %v624
      %v626 = vand.u32 %v625, 4294901760
      %627 = vmatmul.f32.gmra.mxu0 %v626
      %v628 = vpop.f32.mrf.mxu0
      %v629 = vadd.f32 %v529, %v628
      %v630 = vand.u32 %v229, 4294901760
      %v631 = vsub.f32 %v229, %v630
      %v632 = vand.u32 %v631, 4294901760
      %633 = vmatmul.f32.gmra.mxu0 %v632
      %v634 = vpop.f32.mrf.mxu0
      %v635 = vadd.f32 %v534, %v634
      %v636 = vand.u32 %v232, 4294901760
      %v637 = vsub.f32 %v232, %v636
      %v638 = vand.u32 %v637, 4294901760
      %639 = vmatmul.f32.gmra.mxu0 %v638
      %v640 = vpop.f32.mrf.mxu0
      %v641 = vadd.f32 %v539, %v640
      %v642 = vand.u32 %v235, 4294901760
      %v643 = vsub.f32 %v235, %v642
      %v644 = vand.u32 %v643, 4294901760
      %645 = vmatmul.f32.gmra.mxu0 %v644
      %v646 = vpop.f32.mrf.mxu0
      %v647 = vadd.f32 %v544, %v646
      %v648 = vand.u32 %v238, 4294901760
      %v649 = vsub.f32 %v238, %v648
      %v650 = vand.u32 %v649, 4294901760
      %651 = vmatmul.f32.gmra.mxu0 %v650
      %v652 = vpop.f32.mrf.mxu0
      %v653 = vadd.f32 %v549, %v652
      %v654 = vand.u32 %v241, 4294901760
      %v655 = vsub.f32 %v241, %v654
      %v656 = vand.u32 %v655, 4294901760
      %657 = vmatmul.f32.gmra.mxu0 %v656
      %v658 = vpop.f32.mrf.mxu0
      %v659 = vadd.f32 %v554, %v658
      %v660 = vand.u32 %v244, 4294901760
      %v661 = vsub.f32 %v244, %v660
      %v662 = vand.u32 %v661, 4294901760
      %663 = vmatmul.f32.gmra.mxu0 %v662
      %v664 = vpop.f32.mrf.mxu0
      %v665 = vadd.f32 %v559, %v664
      %v666 = vand.u32 %v247, 4294901760
      %v667 = vsub.f32 %v247, %v666
      %v668 = vand.u32 %v667, 4294901760
      %669 = vmatmul.f32.gmra.mxu0 %v668
      %v670 = vpop.f32.mrf.mxu0
      %v671 = vadd.f32 %v564, %v670
      %v672 = vand.u32 %v250, 4294901760
      %v673 = vsub.f32 %v250, %v672
      %v674 = vand.u32 %v673, 4294901760
      %675 = vmatmul.f32.gmra.mxu0 %v674
      %v676 = vpop.f32.mrf.mxu0
      %v677 = vadd.f32 %v569, %v676
      %v678 = vand.u32 %v253, 4294901760
      %v679 = vsub.f32 %v253, %v678
      %v680 = vand.u32 %v679, 4294901760
      %681 = vmatmul.f32.gmra.mxu0 %v680
      %v682 = vpop.f32.mrf.mxu0
      %v683 = vadd.f32 %v574, %v682
      %v684 = vand.u32 %v256, 4294901760
      %v685 = vsub.f32 %v256, %v684
      %v686 = vand.u32 %v685, 4294901760
      %687 = vmatmul.f32.gmra.mxu0 %v686
      %v688 = vpop.f32.mrf.mxu0
      %v689 = vadd.f32 %v579, %v688
      %v690 = vand.u32 %v259, 4294901760
      %v691 = vsub.f32 %v259, %v690
      %v692 = vand.u32 %v691, 4294901760
      %693 = vmatmul.f32.gmra.mxu0 %v692
      %v694 = vpop.f32.mrf.mxu0
      %v695 = vadd.f32 %v584, %v694
      %v696 = vand.u32 %v262, 4294901760
      %v697 = vsub.f32 %v262, %v696
      %v698 = vand.u32 %v697, 4294901760
      %699 = vmatmul.f32.gmra.mxu0 %v698
      %v700 = vpop.f32.mrf.mxu0
      %v701 = vadd.f32 %v589, %v700
      %v702 = vand.u32 %v265, 4294901760
      %v703 = vsub.f32 %v265, %v702
      %v704 = vand.u32 %v703, 4294901760
      %705 = vmatmul.f32.gmra.mxu0 %v704
      %v706 = vpop.f32.mrf.mxu0
      %v707 = vadd.f32 %v594, %v706
      %v708 = vand.u32 %v268, 4294901760
      %v709 = vsub.f32 %v268, %v708
      %v710 = vand.u32 %v709, 4294901760
      %711 = vmatmul.f32.gmra.mxu0 %v710
      %v712 = vpop.f32.mrf.mxu0
      %v713 = vadd.f32 %v599, %v712
      %714 = vdwg.mxu0
      %715 = vmatpush.msra.mxu0 0.0
      %716 = vmatpush.msra.mxu0 0.0
      %717 = vmatpush.msra.mxu0 0.0
      %718 = vmatpush.msra.mxu0 0.0
      %719 = vmatpush.msra.mxu0 0.0
      %720 = vmatpush.msra.mxu0 0.0
      %721 = vmatpush.msra.mxu0 0.0
      %722 = vmatpush.msra.mxu0 0.0
      %723 = vmatpush.msra.mxu0 0.0
      %724 = vmatpush.msra.mxu0 0.0
      %725 = vmatpush.msra.mxu0 0.0
      %726 = vmatpush.msra.mxu0 0.0
      %727 = vmatpush.msra.mxu0 0.0
      %728 = vmatpush.msra.mxu0 0.0
      %729 = vmatpush.msra.mxu0 0.0
      %v730 = vand.u32 %v180, 4294901760
      %v731 = vsub.f32 %v180, %v730
      %v732 = vand.u32 %v731, 4294901760
      %733 = vmatpush.msra.mxu0 %v732
      %v734 = vand.u32 %v223, 4294901760
      %735 = vmatmul.f32.gmra.mxu0 %v734
      %v736 = vpop.f32.mrf.mxu0
      %v737 = vadd.f32 %v623, %v736
      %v738 = vand.u32 %v226, 4294901760
      %739 = vmatmul.f32.gmra.mxu0 %v738
      %v740 = vpop.f32.mrf.mxu0
      %v741 = vadd.f32 %v629, %v740
      %v742 = vand.u32 %v229, 4294901760
      %743 = vmatmul.f32.gmra.mxu0 %v742
      %v744 = vpop.f32.mrf.mxu0
      %v745 = vadd.f32 %v635, %v744
      %v746 = vand.u32 %v232, 4294901760
      %747 = vmatmul.f32.gmra.mxu0 %v746
      %v748 = vpop.f32.mrf.mxu0
      %v749 = vadd.f32 %v641, %v748
      %v750 = vand.u32 %v235, 4294901760
      %751 = vmatmul.f32.gmra.mxu0 %v750
      %v752 = vpop.f32.mrf.mxu0
      %v753 = vadd.f32 %v647, %v752
      %v754 = vand.u32 %v238, 4294901760
      %755 = vmatmul.f32.gmra.mxu0 %v754
      %v756 = vpop.f32.mrf.mxu0
      %v757 = vadd.f32 %v653, %v756
      %v758 = vand.u32 %v241, 4294901760
      %759 = vmatmul.f32.gmra.mxu0 %v758
      %v760 = vpop.f32.mrf.mxu0
      %v761 = vadd.f32 %v659, %v760
      %v762 = vand.u32 %v244, 4294901760
      %763 = vmatmul.f32.gmra.mxu0 %v762
      %v764 = vpop.f32.mrf.mxu0
      %v765 = vadd.f32 %v665, %v764
      %v766 = vand.u32 %v247, 4294901760
      %767 = vmatmul.f32.gmra.mxu0 %v766
      %v768 = vpop.f32.mrf.mxu0
      %v769 = vadd.f32 %v671, %v768
      %v770 = vand.u32 %v250, 4294901760
      %771 = vmatmul.f32.gmra.mxu0 %v770
      %v772 = vpop.f32.mrf.mxu0
      %v773 = vadd.f32 %v677, %v772
      %v774 = vand.u32 %v253, 4294901760
      %775 = vmatmul.f32.gmra.mxu0 %v774
      %v776 = vpop.f32.mrf.mxu0
      %v777 = vadd.f32 %v683, %v776
      %v778 = vand.u32 %v256, 4294901760
      %779 = vmatmul.f32.gmra.mxu0 %v778
      %v780 = vpop.f32.mrf.mxu0
      %v781 = vadd.f32 %v689, %v780
      %v782 = vand.u32 %v259, 4294901760
      %783 = vmatmul.f32.gmra.mxu0 %v782
      %v784 = vpop.f32.mrf.mxu0
      %v785 = vadd.f32 %v695, %v784
      %v786 = vand.u32 %v262, 4294901760
      %787 = vmatmul.f32.gmra.mxu0 %v786
      %v788 = vpop.f32.mrf.mxu0
      %v789 = vadd.f32 %v701, %v788
      %v790 = vand.u32 %v265, 4294901760
      %791 = vmatmul.f32.gmra.mxu0 %v790
      %v792 = vpop.f32.mrf.mxu0
      %v793 = vadd.f32 %v707, %v792
      %v794 = vand.u32 %v268, 4294901760
      %795 = vmatmul.f32.gmra.mxu0 %v794
      %v796 = vpop.f32.mrf.mxu0
      %v797 = vadd.f32 %v713, %v796
      %798 = vdwg.mxu0
      %799 = vmatpush.msra.mxu0 0.0
      %800 = vmatpush.msra.mxu0 0.0
      %801 = vmatpush.msra.mxu0 0.0
      %802 = vmatpush.msra.mxu0 0.0
      %803 = vmatpush.msra.mxu0 0.0
      %804 = vmatpush.msra.mxu0 0.0
      %805 = vmatpush.msra.mxu0 0.0
      %806 = vmatpush.msra.mxu0 0.0
      %807 = vmatpush.msra.mxu0 0.0
      %808 = vmatpush.msra.mxu0 0.0
      %809 = vmatpush.msra.mxu0 0.0
      %810 = vmatpush.msra.mxu0 0.0
      %811 = vmatpush.msra.mxu0 0.0
      %812 = vmatpush.msra.mxu0 0.0
      %813 = vmatpush.msra.mxu0 0.0
      %v814 = vand.u32 %v180, 4294901760
      %815 = vmatpush.msra.mxu0 %v814
      %v816 = vand.u32 %v223, 4294901760
      %817 = vmatmul.f32.gmra.mxu0 %v816
      %v818 = vpop.f32.mrf.mxu0
      %v819 = vadd.f32 %v737, %v818
      %v820 = vand.u32 %v226, 4294901760
      %821 = vmatmul.f32.gmra.mxu0 %v820
      %v822 = vpop.f32.mrf.mxu0
      %v823 = vadd.f32 %v741, %v822
      %v824 = vand.u32 %v229, 4294901760
      %825 = vmatmul.f32.gmra.mxu0 %v824
      %v826 = vpop.f32.mrf.mxu0
      %v827 = vadd.f32 %v745, %v826
      %v828 = vand.u32 %v232, 4294901760
      %829 = vmatmul.f32.gmra.mxu0 %v828
      %v830 = vpop.f32.mrf.mxu0
      %v831 = vadd.f32 %v749, %v830
      %v832 = vand.u32 %v235, 4294901760
      %833 = vmatmul.f32.gmra.mxu0 %v832
      %v834 = vpop.f32.mrf.mxu0
      %v835 = vadd.f32 %v753, %v834
      %v836 = vand.u32 %v238, 4294901760
      %837 = vmatmul.f32.gmra.mxu0 %v836
      %v838 = vpop.f32.mrf.mxu0
      %v839 = vadd.f32 %v757, %v838
      %v840 = vand.u32 %v241, 4294901760
      %841 = vmatmul.f32.gmra.mxu0 %v840
      %v842 = vpop.f32.mrf.mxu0
      %v843 = vadd.f32 %v761, %v842
      %v844 = vand.u32 %v244, 4294901760
      %845 = vmatmul.f32.gmra.mxu0 %v844
      %v846 = vpop.f32.mrf.mxu0
      %v847 = vadd.f32 %v765, %v846
      %v848 = vand.u32 %v247, 4294901760
      %849 = vmatmul.f32.gmra.mxu0 %v848
      %v850 = vpop.f32.mrf.mxu0
      %v851 = vadd.f32 %v769, %v850
      %v852 = vand.u32 %v250, 4294901760
      %853 = vmatmul.f32.gmra.mxu0 %v852
      %v854 = vpop.f32.mrf.mxu0
      %v855 = vadd.f32 %v773, %v854
      %v856 = vand.u32 %v253, 4294901760
      %857 = vmatmul.f32.gmra.mxu0 %v856
      %v858 = vpop.f32.mrf.mxu0
      %v859 = vadd.f32 %v777, %v858
      %v860 = vand.u32 %v256, 4294901760
      %861 = vmatmul.f32.gmra.mxu0 %v860
      %v862 = vpop.f32.mrf.mxu0
      %v863 = vadd.f32 %v781, %v862
      %v864 = vand.u32 %v259, 4294901760
      %865 = vmatmul.f32.gmra.mxu0 %v864
      %v866 = vpop.f32.mrf.mxu0
      %v867 = vadd.f32 %v785, %v866
      %v868 = vand.u32 %v262, 4294901760
      %869 = vmatmul.f32.gmra.mxu0 %v868
      %v870 = vpop.f32.mrf.mxu0
      %v871 = vadd.f32 %v789, %v870
      %v872 = vand.u32 %v265, 4294901760
      %873 = vmatmul.f32.gmra.mxu0 %v872
      %v874 = vpop.f32.mrf.mxu0
      %v875 = vadd.f32 %v793, %v874
      %v876 = vand.u32 %v268, 4294901760
      %877 = vmatmul.f32.gmra.mxu0 %v876
      %v878 = vpop.f32.mrf.mxu0
      %v879 = vadd.f32 %v797, %v878
      %880 = vdwg.mxu0
      %v881 = vmax.f32 %v819, 0.0
      %v882 = vmax.f32 %v823, 0.0
      %v883 = vmax.f32 %v827, 0.0
      %v884 = vmax.f32 %v831, 0.0
      %v885 = vmax.f32 %v835, 0.0
      %v886 = vmax.f32 %v839, 0.0
      %v887 = vmax.f32 %v843, 0.0
      %v888 = vmax.f32 %v847, 0.0
      %v889 = vmax.f32 %v851, 0.0
      %v890 = vmax.f32 %v855, 0.0
      %v891 = vmax.f32 %v859, 0.0
      %v892 = vmax.f32 %v863, 0.0
      %v893 = vmax.f32 %v867, 0.0
      %v894 = vmax.f32 %v871, 0.0
      %v895 = vmax.f32 %v875, 0.0
      %v896 = vmax.f32 %v879, 0.0
      %v897 = vlaneseq
      %v898 = vand.u32 %v897, 127
      %vm899 = vcmp.lt.s32.totalorder %v898, 100
      %v900 = vlaneseq
      %v901 = vshrl.u32 %v900, 7
      %v902 = vadd.s32 %v901, 8
      %v903 = vadd.s32 %v901, 16
      %v904 = vadd.s32 %v901, 24
      %v905 = vadd.s32 %v901, 32
      %v906 = vadd.s32 %v901, 40
      %v907 = vadd.s32 %v901, 48
      %v908 = vadd.s32 %v901, 56
      %v909 = vadd.s32 %v901, 64
      %v910 = vadd.s32 %v901, 72
      %v911 = vadd.s32 %v901, 80
      %v912 = vadd.s32 %v901, 88
      %v913 = vadd.s32 %v901, 96
      %v914 = vadd.s32 %v901, 104
      %v915 = vadd.s32 %v901, 112
      %v916 = vadd.s32 %v901, 120
      %s917 = smul.u32 %s18, 128
      %v918 = vstv %s917
      %v919 = vadd.s32 %v901, %v918
      %v920 = vadd.s32 %v902, %v918
      %v921 = vadd.s32 %v903, %v918
      %v922 = vadd.s32 %v904, %v918
      %v923 = vadd.s32 %v905, %v918
      %v924 = vadd.s32 %v906, %v918
      %v925 = vadd.s32 %v907, %v918
      %v926 = vadd.s32 %v908, %v918
      %v927 = vadd.s32 %v909, %v918
      %v928 = vadd.s32 %v910, %v918
      %v929 = vadd.s32 %v911, %v918
      %v930 = vadd.s32 %v912, %v918
      %v931 = vadd.s32 %v913, %v918
      %v932 = vadd.s32 %v914, %v918
      %v933 = vadd.s32 %v915, %v918
      %v934 = vadd.s32 %v916, %v918
      %vm935 = vcmp.lt.s32.totalorder %v919, 200
      %vm936 = vcmp.lt.s32.totalorder %v920, 200
      %vm937 = vcmp.lt.s32.totalorder %v921, 200
      %vm938 = vcmp.lt.s32.totalorder %v922, 200
      %vm939 = vcmp.lt.s32.totalorder %v923, 200
      %vm940 = vcmp.lt.s32.totalorder %v924, 200
      %vm941 = vcmp.lt.s32.totalorder %v925, 200
      %vm942 = vcmp.lt.s32.totalorder %v926, 200
      %vm943 = vcmp.lt.s32.totalorder %v927, 200
      %vm944 = vcmp.lt.s32.totalorder %v928, 200
      %vm945 = vcmp.lt.s32.totalorder %v929, 200
      %vm946 = vcmp.lt.s32.totalorder %v930, 200
      %vm947 = vcmp.lt.s32.totalorder %v931, 200
      %vm948 = vcmp.lt.s32.totalorder %v932, 200
      %vm949 = vcmp.lt.s32.totalorder %v933, 200
      %vm950 = vcmp.lt.s32.totalorder %v934, 200
      %v951 = vsel %vm935, 1, 0
      %v952 = vsel %vm936, 1, 0
      %v953 = vsel %vm937, 1, 0
      %v954 = vsel %vm938, 1, 0
      %v955 = vsel %vm939, 1, 0
      %v956 = vsel %vm940, 1, 0
      %v957 = vsel %vm941, 1, 0
      %v958 = vsel %vm942, 1, 0
      %v959 = vsel %vm943, 1, 0
      %v960 = vsel %vm944, 1, 0
      %v961 = vsel %vm945, 1, 0
      %v962 = vsel %vm946, 1, 0
      %v963 = vsel %vm947, 1, 0
      %v964 = vsel %vm948, 1, 0
      %v965 = vsel %vm949, 1, 0
      %v966 = vsel %vm950, 1, 0
      %vm967 = vcmp.eq.s32.totalorder %v951, 1
      %vm968 = vcmp.eq.s32.totalorder %v952, 1
      %vm969 = vcmp.eq.s32.totalorder %v953, 1
      %vm970 = vcmp.eq.s32.totalorder %v954, 1
      %vm971 = vcmp.eq.s32.totalorder %v955, 1
      %vm972 = vcmp.eq.s32.totalorder %v956, 1
      %vm973 = vcmp.eq.s32.totalorder %v957, 1
      %vm974 = vcmp.eq.s32.totalorder %v958, 1
      %vm975 = vcmp.eq.s32.totalorder %v959, 1
      %vm976 = vcmp.eq.s32.totalorder %v960, 1
      %vm977 = vcmp.eq.s32.totalorder %v961, 1
      %vm978 = vcmp.eq.s32.totalorder %v962, 1
      %vm979 = vcmp.eq.s32.totalorder %v963, 1
      %vm980 = vcmp.eq.s32.totalorder %v964, 1
      %vm981 = vcmp.eq.s32.totalorder %v965, 1
      %vm982 = vcmp.eq.s32.totalorder %v966, 1
      %v983 = vsel %vm967, %v881, 1e+30
      %v984 = vsel %vm968, %v882, 1e+30
      %v985 = vsel %vm969, %v883, 1e+30
      %v986 = vsel %vm970, %v884, 1e+30
      %v987 = vsel %vm971, %v885, 1e+30
      %v988 = vsel %vm972, %v886, 1e+30
      %v989 = vsel %vm973, %v887, 1e+30
      %v990 = vsel %vm974, %v888, 1e+30
      %v991 = vsel %vm975, %v889, 1e+30
      %v992 = vsel %vm976, %v890, 1e+30
      %v993 = vsel %vm977, %v891, 1e+30
      %v994 = vsel %vm978, %v892, 1e+30
      %v995 = vsel %vm979, %v893, 1e+30
      %v996 = vsel %vm980, %v894, 1e+30
      %v997 = vsel %vm981, %v895, 1e+30
      %v998 = vsel %vm982, %v896, 1e+30
      %v999 = vsel %vm899, 1, 0
      %vm1000 = vcmp.eq.s32.totalorder %v999, 1
      %v1001 = vsel %vm1000, %v881, 1e+30
      %v1002 = vsel %vm1000, %v882, 1e+30
      %v1003 = vsel %vm1000, %v883, 1e+30
      %v1004 = vsel %vm1000, %v884, 1e+30
      %v1005 = vsel %vm1000, %v885, 1e+30
      %v1006 = vsel %vm1000, %v886, 1e+30
      %v1007 = vsel %vm1000, %v887, 1e+30
      %v1008 = vsel %vm1000, %v888, 1e+30
      %v1009 = vsel %vm1000, %v889, 1e+30
      %v1010 = vsel %vm1000, %v890, 1e+30
      %v1011 = vsel %vm1000, %v891, 1e+30
      %v1012 = vsel %vm1000, %v892, 1e+30
      %v1013 = vsel %vm1000, %v893, 1e+30
      %v1014 = vsel %vm1000, %v894, 1e+30
      %v1015 = vsel %vm1000, %v895, 1e+30
      %v1016 = vsel %vm1000, %v896, 1e+30
      %v1017 = vmin.f32 %v983, %v987
      %v1018 = vmin.f32 %v984, %v988
      %v1019 = vmin.f32 %v985, %v989
      %v1020 = vmin.f32 %v986, %v990
      %v1021 = vmin.f32 %v1017, %v991
      %v1022 = vmin.f32 %v1018, %v992
      %v1023 = vmin.f32 %v1019, %v993
      %v1024 = vmin.f32 %v1020, %v994
      %v1025 = vmin.f32 %v1021, %v995
      %v1026 = vmin.f32 %v1022, %v996
      %v1027 = vmin.f32 %v1023, %v997
      %v1028 = vmin.f32 %v1024, %v998
      %v1029 = vmin.f32 %v1025, %v1026
      %v1030 = vmin.f32 %v1027, %v1028
      %v1031 = vmin.f32 %v1029, %v1030
      %v1032 = vrot.slane %v1031, 4
      %v1033 = vmin.f32 %v1031, %v1032
      %v1034 = vrot.slane %v1033, 2
      %v1035 = vmin.f32 %v1033, %v1034
      %v1036 = vrot.slane %v1035, 1
      %v1037 = vmin.f32 %v1035, %v1036
      %1038 = vmin.xlane.f32.xlu0 %v1001
      %v1039 = vpop.xlane.xlu0 %1038
      %1040 = vmin.xlane.f32.xlu0 %v1002
      %v1041 = vpop.xlane.xlu0 %1040
      %1042 = vmin.xlane.f32.xlu0 %v1003
      %v1043 = vpop.xlane.xlu0 %1042
      %1044 = vmin.xlane.f32.xlu0 %v1004
      %v1045 = vpop.xlane.xlu0 %1044
      %1046 = vmin.xlane.f32.xlu0 %v1005
      %v1047 = vpop.xlane.xlu0 %1046
      %1048 = vmin.xlane.f32.xlu0 %v1006
      %v1049 = vpop.xlane.xlu0 %1048
      %1050 = vmin.xlane.f32.xlu0 %v1007
      %v1051 = vpop.xlane.xlu0 %1050
      %1052 = vmin.xlane.f32.xlu0 %v1008
      %v1053 = vpop.xlane.xlu0 %1052
      %1054 = vmin.xlane.f32.xlu0 %v1009
      %v1055 = vpop.xlane.xlu0 %1054
      %1056 = vmin.xlane.f32.xlu0 %v1010
      %v1057 = vpop.xlane.xlu0 %1056
      %1058 = vmin.xlane.f32.xlu0 %v1011
      %v1059 = vpop.xlane.xlu0 %1058
      %1060 = vmin.xlane.f32.xlu0 %v1012
      %v1061 = vpop.xlane.xlu0 %1060
      %1062 = vmin.xlane.f32.xlu0 %v1013
      %v1063 = vpop.xlane.xlu0 %1062
      %1064 = vmin.xlane.f32.xlu0 %v1014
      %v1065 = vpop.xlane.xlu0 %1064
      %1066 = vmin.xlane.f32.xlu0 %v1015
      %v1067 = vpop.xlane.xlu0 %1066
      %1068 = vmin.xlane.f32.xlu0 %v1016
      %v1069 = vpop.xlane.xlu0 %1068
      %v1070 = vld [vmem:[#allocation3] sm:$0x1]
      %v1071 = vsel %vm935, %v1039, 0.0
      %v1072 = vsel %vm936, %v1041, 0.0
      %v1073 = vsel %vm937, %v1043, 0.0
      %v1074 = vsel %vm938, %v1045, 0.0
      %v1075 = vsel %vm939, %v1047, 0.0
      %v1076 = vsel %vm940, %v1049, 0.0
      %v1077 = vsel %vm941, %v1051, 0.0
      %v1078 = vsel %vm942, %v1053, 0.0
      %v1079 = vsel %vm943, %v1055, 0.0
      %v1080 = vsel %vm944, %v1057, 0.0
      %v1081 = vsel %vm945, %v1059, 0.0
      %v1082 = vsel %vm946, %v1061, 0.0
      %v1083 = vsel %vm947, %v1063, 0.0
      %v1084 = vsel %vm948, %v1065, 0.0
      %v1085 = vsel %vm949, %v1067, 0.0
      %v1086 = vsel %vm950, %v1069, 0.0
      %v1087 = vadd.f32 %v1071, %v1072
      %v1088 = vadd.f32 %v1087, %v1073
      %v1089 = vadd.f32 %v1088, %v1074
      %v1090 = vadd.f32 %v1089, %v1075
      %v1091 = vadd.f32 %v1090, %v1076
      %v1092 = vadd.f32 %v1091, %v1077
      %v1093 = vadd.f32 %v1092, %v1078
      %v1094 = vadd.f32 %v1093, %v1079
      %v1095 = vadd.f32 %v1094, %v1080
      %v1096 = vadd.f32 %v1095, %v1081
      %v1097 = vadd.f32 %v1096, %v1082
      %v1098 = vadd.f32 %v1097, %v1083
      %v1099 = vadd.f32 %v1098, %v1084
      %v1100 = vadd.f32 %v1099, %v1085
      %v1101 = vadd.f32 %v1100, %v1086
      %v1102 = vrot.slane %v1101, 4
      %v1103 = vadd.f32 %v1101, %v1102
      %v1104 = vrot.slane %v1103, 2
      %v1105 = vadd.f32 %v1103, %v1104
      %v1106 = vrot.slane %v1105, 1
      %v1107 = vadd.f32 %v1105, %v1106
      %v1108 = vadd.f32 %v1070, %v1107
      %vm1109 = vcmask 0
      %1110 = vst.msk [vmem:[#allocation3] sm:$0x1] %vm1109, %v1108
      %v1111 = vld [vmem:[#allocation2] sm:$0x1]
      %v1112 = vmin.f32 %v1111, %v1037
      %1113 = vst [vmem:[#allocation2] sm:$0x1] %v1112
      %p1114 = scmp.eq.s32.totalorder %s18, 1
      // Predicated region
      $region33: #{mesh_loss_forward.1} parent=27 // pred_check
        %p1115 = pneg %p1114
      $region34: #{mesh_loss_forward.1} parent=27 // pred_check_branch
        %1117 = sbr.rel (%p1115) target = $region36
      $region35: #{mesh_loss_forward.1} parent=27 // pred_region
        %v1118 = vld [vmem:[#allocation2] sm:$0x1]
        %v1119 = vsel %vm899, %v1118, 0.0
        %vm1120 = vcmask 1040384
        %v1121 = vsel %vm1120, %v1119, 0.0
        %1122 = vadd.xlane.f32.xlu0 %v1121
        %v1123 = vpop.xlane.xlu0 %1122
        %v1124 = vrot.slane %v1123, 4
        %v1125 = vadd.f32 %v1123, %v1124
        %v1126 = vrot.slane %v1125, 2
        %v1127 = vadd.f32 %v1125, %v1126
        %v1128 = vrot.slane %v1127, 1
        %v1129 = vadd.f32 %v1127, %v1128
        %s1130 = vtos %v1129
        %v1131 = vld [vmem:[#allocation3] sm:$0x1]
        %v1132 = vadd.f32 %v1131, 0.0
        %s1133 = vtos %v1132
        %vm1134 = vcmp.eq.s32.totalorder %v898, 0
        %v1135 = vstv %s1130
        %v1136 = vsel %vm1134, %v1135, 0.0
        %vm1137 = vcmp.eq.s32.totalorder %v898, 1
        %v1138 = vstv %s1133
        %v1139 = vsel %vm1137, %v1138, 0.0
        %v1140 = vadd.f32 %v1136, %v1139
        %1141 = vst [vmem:[%s179] sm:$0x1] %v1140
      $region36: #{mesh_loss_forward.1} parent=27 // pred_fallthru
        _
      %p1142 = scmp.lt.s32.totalorder %s17, 1
      %s1143 = scalar_select %p1142, %s17, 1
      %s1144 = scalar_lea.vmem %s2, %s1143
      // Predicated region
      $region37: #{mesh_loss_forward.1} parent=27 // pred_check
        %p1145 = pneg %p97
      $region38: #{mesh_loss_forward.1} parent=27 // pred_check_branch
        %1147 = sbr.rel (%p1145) target = $region40
      $region39: #{mesh_loss_forward.1} parent=27 // pred_region
        _
      $region40: #{mesh_loss_forward.1} parent=27 // pred_fallthru
        _
    $region28: #{mesh_loss_forward.1} parent=5 // pred_fallthru
      _
    %p1148 = scmp.le.s32.totalorder 2, %s8
    // Predicated region
    $region41: #{mesh_loss_forward.1} parent=5 // pred_check
      %p1149 = pneg %p1148
    $region42: #{mesh_loss_forward.1} parent=5 // pred_check_branch
      %1151 = sbr.rel (%p1149) target = $region44
    $region43: #{mesh_loss_forward.1} parent=5 // pred_region
      %s1152 = ssub.s32 %s8, 2
      // Predicated region
      $region45: #{mesh_loss_forward.1} parent=43 // pred_check
        %p1153 = pneg %p103
      $region46: #{mesh_loss_forward.1} parent=43 // pred_check_branch
        %1155 = sbr.rel (%p1153) target = $region48
      $region47: #{mesh_loss_forward.1} parent=43 // pred_region
        %p1156 = scmp.lt.s32.totalorder %s19, 1
        %s1157 = scalar_select %p1156, %s19, 1
        %s1158 = scalar_lea.vmem %s2, %s1157
      $region48: #{mesh_loss_forward.1} parent=43 // pred_fallthru
        _
    $region44: #{mesh_loss_forward.1} parent=5 // pred_fallthru
      _
  $region6: #{mesh_loss_forward.1} parent=0 // loop_footer
    %s12 = sadd.s32 1, %s8
  $region7: #{mesh_loss_forward.1} parent=0 // loop_footer_branch
    %7 = sbr.rel target = $region3
  $region8: #{mesh_loss_forward.1} parent=0 // loop_exit
    _

</llo_original>
